<compile_context>
chip_gen: v7x
topology: tpu7x:2x2x1
jax: 0.10.0
libtpu: 0.0.40
codegen_flags: <defaults>
</compile_context>

<pallas_src>
import functools

import jax
import jax.numpy as jnp
from jax.experimental import pallas as pl
from jax.experimental.pallas import tpu as pltpu


def _round_up(x, m):
    return (x + m - 1) // m * m


def _pad2d(x, rows, cols):
    pr = rows - x.shape[0]
    pc = cols - x.shape[1]
    if pr == 0 and pc == 0:
        return x
    return jnp.pad(x, ((0, pr), (0, pc)))


def _tile_footprint(tb1, tb2, d, emb_bytes, lab_bytes, lab_rows, lab_cols):
    """Approximate double-buffered VMEM bytes for one grid step."""
    lab_tile = (tb1 if lab_rows else 1) * (tb2 if lab_cols else 128) * lab_bytes
    one = (tb1 * d * emb_bytes        # output1 tile
           + d * tb2 * emb_bytes      # output2^T tile
           + tb1 * 128 * 4            # ||o1||^2 (lane padded)
           + 8 * tb2 * 4              # ||o2||^2 (sublane padded)
           + lab_tile                 # label tile
           + 8 * 128 * 4)             # output slab
    return 2 * one + 8 * tb2 * 4      # double buffering + accumulator scratch


def _contrastive_kernel(o1_ref, o2t_ref, sq1_ref, sq2_ref, label_ref,
                        out_ref, acc_ref, *,
                        margin, b1, b2, tb1, tb2, mask_rows, mask_cols):
    i = pl.program_id(0)
    j = pl.program_id(1)

    # Zero the per-row-tile vector accumulator at the start of each sweep.
    @pl.when(j == 0)
    def _():
        acc_ref[...] = jnp.zeros_like(acc_ref)

    # ||a-b||^2 = ||a||^2 + ||b||^2 - 2 a.b: norms precomputed in the wrapper,
    # RHS pre-transposed, so the heavy work is one MXU matmul.
    inner = jnp.dot(o1_ref[...], o2t_ref[...],
                    preferred_element_type=jnp.float32)            # (tb1, tb2)
    d2 = sq1_ref[...] + sq2_ref[...] - 2.0 * inner
    d2 = jnp.maximum(d2, 0.0)                                      # roundoff guard
    dist = jnp.sqrt(d2)

    # label tile may be thin ((1,1), (tb1,1), (1,tb2)) or full; it broadcasts.
    label = label_ref[...].astype(jnp.float32)
    hinge = jnp.maximum(margin - dist, 0.0)
    # (1 - label) * d2 + label * hinge^2  ==  d2 + label * (hinge^2 - d2)
    contrib = d2 + label * (hinge * hinge - d2)

    # Zero padded rows/cols so the mean divisor stays exactly b1*b2.
    if mask_rows or mask_cols:
        ok = None
        if mask_rows:
            row = jax.lax.broadcasted_iota(jnp.int32, (tb1, tb2), 0) + i * tb1
            ok = row < b1
        if mask_cols:
            col = jax.lax.broadcasted_iota(jnp.int32, (tb1, tb2), 1) + j * tb2
            ok = (col < b2) if ok is None else (ok & (col < b2))
        contrib = jnp.where(ok, contrib, 0.0)

    # Hot-path reduction: fold only the sublane groups -> pure vreg VPU adds,
    # no cross-lane (XLU) movement and no per-step scalar store.
    acc_ref[...] += contrib.reshape(tb1 // 8, 8, tb2).sum(axis=0)

    # Finalize once per row tile: fold lane groups into a lane-dense (8,128)
    # partial-sum slab (single unmasked store); wrapper sums the slabs.
    @pl.when(j == pl.num_programs(1) - 1)
    def _():
        acc = acc_ref[...]
        slab = acc[:, 0:128]
        for k in range(1, tb2 // 128):
            slab = slab + acc[:, k * 128:(k + 1) * 128]
        out_ref[0] = slab


def contrastive_loss(output1, output2, label, margin=2.0, *,
                     tb1=None, tb2=None, matmul_dtype=None, interpret=False):
    """Pallas TPU ContrastiveLoss.forward (torch.cdist semantics).

    output1: (B1, D), output2: (B2, D), label broadcastable against (B1, B2).
    Returns scalar f32 loss = mean over all (B1, B2) pairs.
    """
    b1, d = output1.shape
    b2, d2_ = output2.shape
    assert d == d2_, "feature dims must match"

    # ---- label normalization: keep it narrow and thin ---------------------
    label = jnp.asarray(label)
    if label.dtype == jnp.bool_:
        label = label.astype(jnp.int8)          # 1 byte/elt on the only O(B1*B2) stream
    elif label.dtype.itemsize > 4:
        label = label.astype(jnp.float32 if jnp.issubdtype(label.dtype, jnp.floating)
                             else jnp.int32)
    if label.ndim == 0:
        label = label.reshape(1, 1)
    elif label.ndim == 1:
        label = label.reshape(1, -1)
    assert label.ndim == 2, "label must broadcast against the (B1, B2) distance matrix"
    assert label.shape[0] in (1, b1) and label.shape[1] in (1, b2), \
        f"label shape {label.shape} does not broadcast against ({b1}, {b2})"
    lab_full_rows = label.shape[0] == b1
    lab_full_cols = label.shape[1] == b2
    lab_bytes = label.dtype.itemsize

    emb_dtype = jnp.dtype(matmul_dtype) if matmul_dtype is not None else output1.dtype
    emb_bytes = jnp.dtype(emb_dtype).itemsize

    # ---- tile selection ----------------------------------------------------
    # Sublane granularity: packed dtypes streamed with a tb1-sized sublane
    # window need tb1 to be a multiple of their native tile (32 for int8,
    # 16 for bf16, 8 for f32).
    sub = max(8, 32 // max(1, emb_bytes))
    if lab_full_rows:
        sub = max(sub, 32 // max(1, lab_bytes))

    budget = 36 * 1024 * 1024  # double-buffered stream budget (v7x 64 MiB safe)

    b1r = _round_up(b1, sub)
    b2r = _round_up(b2, 128)

    if tb1 is None:
        # Largest sublane tile <= 512, but keep >= 2 row tiles whenever B1
        # allows so the "parallel" axis actually shards across v7x's two TCs.
        tb1 = min(512, b1r)
        if b1r > sub:
            tb1 = min(tb1, _round_up((b1r + 1) // 2, sub))
    else:
        tb1 = _round_up(tb1, sub)

    def _fp(t1, t2):
        return _tile_footprint(t1, t2, d, emb_bytes, lab_bytes,
                               lab_full_rows, lab_full_cols)

    if tb2 is None:
        # Prefer covering all of (padded) B2 in one tile so o2^T is fetched
        # once and stays VMEM-resident (no n_i-fold re-streaming); otherwise
        # the largest lane tile that fits the budget.
        candidates = ([b2r] if b2r <= 2048 else []) + \
                     [c for c in (2048, 1024, 512, 256, 128) if c < b2r]
        tb2 = None
        for c in candidates:
            if _fp(tb1, c) <= budget:
                tb2 = c
                break
        if tb2 is None:
            tb2 = 128
            while tb1 > sub and _fp(tb1, tb2) > budget:
                tb1 = max(sub, _round_up(tb1 // 2, sub))
    else:
        tb2 = _round_up(tb2, 128)

    b1p = _round_up(b1, tb1)
    b2p = _round_up(b2, tb2)
    n_i = b1p // tb1
    n_j = b2p // tb2

    fp = _fp(tb1, tb2)
    vmem_limit = int(max(32 * 1024 * 1024, fp + (4 << 20)))

    # ---- one-time wrapper prep --------------------------------------------
    o1p = _pad2d(output1, b1p, d)
    o2p = _pad2d(output2, b2p, d)
    sq1 = jnp.sum(o1p.astype(jnp.float32) ** 2, axis=1, keepdims=True)   # (B1p, 1)
    sq2 = jnp.sum(o2p.astype(jnp.float32) ** 2, axis=1)[None, :]         # (1, B2p)
    if matmul_dtype is not None:
        o1p = o1p.astype(emb_dtype)
        o2p = o2p.astype(emb_dtype)
    o2t = o2p.T                                                           # (D, B2p)

    labp = _pad2d(label,
                  b1p if lab_full_rows else 1,
                  b2p if lab_full_cols else 1)
    lr = tb1 if lab_full_rows else 1
    lc = tb2 if lab_full_cols else 1

    def lab_imap(i, j, rf=lab_full_rows, cf=lab_full_cols):
        return (i if rf else 0, j if cf else 0)

    kernel = functools.partial(
        _contrastive_kernel, margin=float(margin), b1=b1, b2=b2,
        tb1=tb1, tb2=tb2, mask_rows=(b1p != b1), mask_cols=(b2p != b2))

    out = pl.pallas_call(
        kernel,
        out_shape=jax.ShapeDtypeStruct((n_i, 8, 128), jnp.float32),
        grid_spec=pltpu.PrefetchScalarGridSpec(
            num_scalar_prefetch=0,
            grid=(n_i, n_j),
            in_specs=[
                pl.BlockSpec((tb1, d), lambda i, j: (i, 0)),      # output1 tile
                pl.BlockSpec((d, tb2), lambda i, j: (0, j)),      # output2^T tile
                pl.BlockSpec((tb1, 1), lambda i, j: (i, 0)),      # ||o1||^2
                pl.BlockSpec((1, tb2), lambda i, j: (0, j)),      # ||o2||^2
                pl.BlockSpec((lr, lc), lab_imap),                 # label (thin or full)
            ],
            out_specs=pl.BlockSpec((1, 8, 128), lambda i, j: (i, 0, 0)),
            scratch_shapes=[pltpu.VMEM((8, tb2), jnp.float32)],
        ),
        compiler_params=pltpu.CompilerParams(
            dimension_semantics=("parallel", "arbitrary"),
            vmem_limit_bytes=vmem_limit,
        ),
        interpret=interpret,
    )(o1p, o2t, sq1, sq2, labp)

    # Each row tile wrote a partial-sum slab; padding contributed zero, so the
    # full sum over the slabs is the exact total.  Mean scaling done here.
    return jnp.sum(out) * (1.0 / float(b1 * b2))


def _reference_loss(output1, output2, label, margin=2.0):
    # Pure-JAX reference mirroring the PyTorch module.
    diff = output1[:, None, :] - output2[None, :, :]
    dist = jnp.sqrt(jnp.maximum(jnp.sum(diff * diff, axis=-1), 0.0))
    loss = (1.0 - label) * dist**2 + label * jnp.maximum(margin - dist, 0.0) ** 2
    return jnp.mean(loss)


if __name__ == "__main__":
    key = jax.random.PRNGKey(0)
    k1, k2, k3, k4, k5, k6 = jax.random.split(key, 6)

    # Case 1: non-aligned shapes, multi-tile (2x2) grid, full (B1, B2) label
    # streamed as int8 (narrow-dtype path), explicit tb2 to force a j-sweep.
    B1, B2, D = 40, 200, 32
    output1 = jax.random.normal(k1, (B1, D), dtype=jnp.float32)
    output2 = jax.random.normal(k2, (B2, D), dtype=jnp.float32)
    label = jax.random.bernoulli(k3, p=0.5, shape=(B1, B2))        # bool -> int8 inside
    loss = jax.block_until_ready(
        contrastive_loss(output1, output2, label, margin=2.0, tb2=128))
    ref = jax.block_until_ready(
        _reference_loss(output1, output2, label.astype(jnp.float32), 2.0))
    assert jnp.allclose(loss, ref, rtol=1e-4, atol=1e-5), (loss, ref)

    # Case 2: thin per-row label (B1, 1) -> thin BlockSpec, in-kernel
    # broadcast, no O(B1*B2) label stream at all.
    B1b, B2b, Db = 16, 16, 64
    o1b = jax.random.normal(k4, (B1b, Db), dtype=jnp.float32)
    o2b = jax.random.normal(k5, (B2b, Db), dtype=jnp.float32)
    labb = jax.random.bernoulli(k6, p=0.5, shape=(B1b, 1)).astype(jnp.float32)
    loss_b = jax.block_until_ready(contrastive_loss(o1b, o2b, labb, margin=2.0))
    ref_b = jax.block_until_ready(_reference_loss(o1b, o2b, labb, 2.0))
    assert jnp.allclose(loss_b, ref_b, rtol=1e-4, atol=1e-5), (loss_b, ref_b)

    print("KERNEL_OK")
</pallas_src>

<mosaic_0001>
module attributes {stable_mosaic.version = 11 : i64} {
  func.func @_contrastive_kernel(%arg0: i32, %arg1: i32, %arg2: memref<32x32xf32, #tpu.memory_space<vmem>>, %arg3: memref<32x128xf32, #tpu.memory_space<vmem>>, %arg4: memref<32x1xf32, #tpu.memory_space<vmem>>, %arg5: memref<1x128xf32, #tpu.memory_space<vmem>>, %arg6: memref<32x128xi8, #tpu.memory_space<vmem>>, %arg7: memref<1x8x128xf32, #tpu.memory_space<vmem>>, %arg8: memref<8x128xf32, #tpu.memory_space<vmem>>) attributes {dimension_semantics = [#tpu.dimension_semantics<parallel>, #tpu.dimension_semantics<arbitrary>], iteration_bounds = array<i64: 2, 2>, scalar_prefetch = 0 : i64, scratch_operands = 1 : i64, tpu.core_type = #tpu.core_type<tc>, window_params = [{transform_indices = @transform_0, window_bounds = array<i64: 32, 32>}, {transform_indices = @transform_1, window_bounds = array<i64: 32, 128>}, {transform_indices = @transform_2, window_bounds = array<i64: 32, 1>}, {transform_indices = @transform_3, window_bounds = array<i64: 1, 128>}, {transform_indices = @transform_4, window_bounds = array<i64: 32, 128>}, {transform_indices = @transform_5, window_bounds = array<i64: 1, 8, 128>}]} {
    %c0_i32 = arith.constant 0 : i32
    %0 = arith.cmpi eq, %arg1, %c0_i32 : i32
    %1 = arith.extui %0 : i1 to i32
    %c0_i32_0 = arith.constant 0 : i32
    %2 = arith.cmpi ne, %1, %c0_i32_0 : i32
    scf.if %2 {
      %cst_21 = arith.constant 0.000000e+00 : f32
      %50 = vector.broadcast %cst_21 : f32 to vector<8x128xf32>
      %c0_22 = arith.constant 0 : index
      %c0_23 = arith.constant 0 : index
      %51 = vector.load %arg8[%c0_22, %c0_23] : memref<8x128xf32, #tpu.memory_space<vmem>>, vector<8x128xf32>
      tpu.vector_store %arg8[%c0_22, %c0_23], %50 {strides = array<i32>} : memref<8x128xf32, #tpu.memory_space<vmem>>, vector<8x128xf32>,
    } else {
    }
    %c0 = arith.constant 0 : index
    %c0_1 = arith.constant 0 : index
    %3 = vector.load %arg2[%c0, %c0_1] : memref<32x32xf32, #tpu.memory_space<vmem>>, vector<32x32xf32>
    %c0_2 = arith.constant 0 : index
    %c0_3 = arith.constant 0 : index
    %4 = vector.load %arg3[%c0_2, %c0_3] : memref<32x128xf32, #tpu.memory_space<vmem>>, vector<32x128xf32>
    %cst = arith.constant dense<0.000000e+00> : vector<32x128xf32>
    %5 = tpu.matmul %3, %4, %cst {dimension_numbers = #tpu.dot_dimension_numbers<[1], [0], [0], [1], [0, 0, 1, 1], [], []>} : vector<32x32xf32>, vector<32x128xf32>, vector<32x128xf32> -> vector<32x128xf32>
    %c0_4 = arith.constant 0 : index
    %c0_5 = arith.constant 0 : index
    %6 = vector.load %arg4[%c0_4, %c0_5] : memref<32x1xf32, #tpu.memory_space<vmem>>, vector<32x1xf32>
    %c0_6 = arith.constant 0 : index
    %c0_7 = arith.constant 0 : index
    %7 = vector.load %arg5[%c0_6, %c0_7] : memref<1x128xf32, #tpu.memory_space<vmem>>, vector<1x128xf32>
    %8 = vector.broadcast %6 : vector<32x1xf32> to vector<32x128xf32>
    %9 = vector.broadcast %7 : vector<1x128xf32> to vector<32x128xf32>
    %10 = arith.addf %8, %9 : vector<32x128xf32>
    %cst_8 = arith.constant 2.000000e+00 : f32
    %11 = vector.broadcast %cst_8 : f32 to vector<32x128xf32>
    %12 = arith.mulf %11, %5 : vector<32x128xf32>
    %13 = arith.subf %10, %12 : vector<32x128xf32>
    %cst_9 = arith.constant 0.000000e+00 : f32
    %14 = vector.broadcast %cst_9 : f32 to vector<32x128xf32>
    %15 = arith.maximumf %13, %14 : vector<32x128xf32>
    %16 = math.sqrt %15 : vector<32x128xf32>
    %c0_10 = arith.constant 0 : index
    %c0_11 = arith.constant 0 : index
    %17 = vector.load %arg6[%c0_10, %c0_11] : memref<32x128xi8, #tpu.memory_space<vmem>>, vector<32x128xi8>
    %18 = arith.sitofp %17 : vector<32x128xi8> to vector<32x128xf32>
    %cst_12 = arith.constant 2.000000e+00 : f32
    %19 = vector.broadcast %cst_12 : f32 to vector<32x128xf32>
    %20 = arith.subf %19, %16 : vector<32x128xf32>
    %cst_13 = arith.constant 0.000000e+00 : f32
    %21 = vector.broadcast %cst_13 : f32 to vector<32x128xf32>
    %22 = arith.maximumf %20, %21 : vector<32x128xf32>
    %23 = arith.mulf %22, %22 : vector<32x128xf32>
    %24 = arith.subf %23, %15 : vector<32x128xf32>
    %25 = arith.mulf %18, %24 : vector<32x128xf32>
    %26 = arith.addf %15, %25 : vector<32x128xf32>
    %27 = tpu.iota {dimensions = array<i32: 0>} : vector<32x128xi32>
    %c32_i32 = arith.constant 32 : i32
    %28 = arith.muli %arg0, %c32_i32 : i32
    %29 = vector.broadcast %28 : i32 to vector<32x128xi32>
    %30 = arith.addi %27, %29 : vector<32x128xi32>
    %c40_i32 = arith.constant 40 : i32
    %31 = vector.broadcast %c40_i32 : i32 to vector<32x128xi32>
    %32 = arith.cmpi slt, %30, %31 : vector<32x128xi32>
    %33 = tpu.iota {dimensions = array<i32: 1>} : vector<32x128xi32>
    %c128_i32 = arith.constant 128 : i32
    %34 = arith.muli %arg1, %c128_i32 : i32
    %35 = vector.broadcast %34 : i32 to vector<32x128xi32>
    %36 = arith.addi %33, %35 : vector<32x128xi32>
    %c200_i32 = arith.constant 200 : i32
    %37 = vector.broadcast %c200_i32 : i32 to vector<32x128xi32>
    %38 = arith.cmpi slt, %36, %37 : vector<32x128xi32>
    %39 = arith.andi %32, %38 : vector<32x128xi1>
    %cst_14 = arith.constant 0.000000e+00 : f32
    %40 = vector.broadcast %cst_14 : f32 to vector<32x128xf32>
    %41 = arith.select %39, %26, %40 : vector<32x128xi1>, vector<32x128xf32>
    %c0_15 = arith.constant 0 : index
    %c0_16 = arith.constant 0 : index
    %42 = vector.load %arg8[%c0_15, %c0_16] : memref<8x128xf32, #tpu.memory_space<vmem>>, vector<8x128xf32>
    %43 = vector.shape_cast %41 : vector<32x128xf32> to vector<4x8x128xf32>
    %cst_17 = arith.constant dense<0.000000e+00> : vector<8x128xf32>
    %44 = vector.multi_reduction <add>, %43, %cst_17 [0] : vector<4x8x128xf32> to vector<8x128xf32>
    %45 = arith.addf %42, %44 : vector<8x128xf32>
    %c0_18 = arith.constant 0 : index
    %c0_19 = arith.constant 0 : index
    %46 = vector.load %arg8[%c0_18, %c0_19] : memref<8x128xf32, #tpu.memory_space<vmem>>, vector<8x128xf32>
    tpu.vector_store %arg8[%c0_18, %c0_19], %45 {strides = array<i32>} : memref<8x128xf32, #tpu.memory_space<vmem>>, vector<8x128xf32>,
    %c1_i32 = arith.constant 1 : i32
    %47 = arith.cmpi eq, %arg1, %c1_i32 : i32
    %48 = arith.extui %47 : i1 to i32
    %c0_i32_20 = arith.constant 0 : i32
    %49 = arith.cmpi ne, %48, %c0_i32_20 : i32
    scf.if %49 {
      %c0_21 = arith.constant 0 : index
      %c0_22 = arith.constant 0 : index
      %50 = vector.load %arg8[%c0_21, %c0_22] : memref<8x128xf32, #tpu.memory_space<vmem>>, vector<8x128xf32>
      %c0_23 = arith.constant 0 : index
      %c0_24 = arith.constant 0 : index
      %c0_25 = arith.constant 0 : index
      %51 = vector.load %arg7[%c0_23, %c0_24, %c0_25] : memref<1x8x128xf32, #tpu.memory_space<vmem>>, vector<1x8x128xf32>
      %52 = vector.shape_cast %51 : vector<1x8x128xf32> to vector<8x128xf32>
      %53 = vector.shape_cast %50 : vector<8x128xf32> to vector<1x8x128xf32>
      tpu.vector_store %arg7[%c0_23, %c0_24, %c0_25], %53 {strides = array<i32>} : memref<1x8x128xf32, #tpu.memory_space<vmem>>, vector<1x8x128xf32>,
    } else {
    }
    return
  }
  func.func @transform_0(%arg0: i32, %arg1: i32) -> (i32, i32) {
    %c0_i32 = arith.constant 0 : i32
    %c0_i32_0 = arith.constant 0 : i32
    return %arg0, %c0_i32 : i32, i32
  }
  func.func @transform_1(%arg0: i32, %arg1: i32) -> (i32, i32) {
    %c0_i32 = arith.constant 0 : i32
    %c0_i32_0 = arith.constant 0 : i32
    return %c0_i32, %arg1 : i32, i32
  }
  func.func @transform_2(%arg0: i32, %arg1: i32) -> (i32, i32) {
    %c0_i32 = arith.constant 0 : i32
    %c0_i32_0 = arith.constant 0 : i32
    return %arg0, %c0_i32 : i32, i32
  }
  func.func @transform_3(%arg0: i32, %arg1: i32) -> (i32, i32) {
    %c0_i32 = arith.constant 0 : i32
    %c0_i32_0 = arith.constant 0 : i32
    return %c0_i32, %arg1 : i32, i32
  }
  func.func @transform_4(%arg0: i32, %arg1: i32) -> (i32, i32) {
    %c0_i32 = arith.constant 0 : i32
    return %arg0, %arg1 : i32, i32
  }
  func.func @transform_5(%arg0: i32, %arg1: i32) -> (i32, i32, i32) {
    %c0_i32 = arith.constant 0 : i32
    %c0_i32_0 = arith.constant 0 : i32
    %c0_i32_1 = arith.constant 0 : i32
    return %arg0, %c0_i32, %c0_i32_0 : i32, i32, i32
  }
}

</mosaic_0001>

<llo_original>
// kernel: tpu_custom_call.1
$region0: #{tpu_custom_call.1}
  #allocation0 [shape = 'u32[]', space=smem, size = 0x4, offset = 0x4, fixed_abs, tag = 'smem constant byte address 0x4 - core index']
  #allocation1 [shape = 'u32[144,128]{1,0:T(1,128)}', space=vmem, size = 0x12000, scoped, tag = 'internal scratch']
  #allocation2 [shape = 'f32[8,128]{1,0:T(8,128)}', space=vmem, size = 0x1000, scoped, tag = 'scratch operand']
  %s0 = inlined_call_operand.vmem [shape: f32[64,32], index: 0, kind: input, shape index: {}]
  %s1 = inlined_call_operand.vmem [shape: f32[32,256], index: 1, kind: input, shape index: {}]
  %s2 = inlined_call_operand.vmem [shape: f32[64,1], index: 2, kind: input, shape index: {}]
  %s3 = inlined_call_operand.vmem [shape: f32[1,256], index: 3, kind: input, shape index: {}]
  %s4 = inlined_call_operand.vmem [shape: s8[64,256], index: 4, kind: input, shape index: {}]
  %s5 = inlined_call_operand.hbm [shape: f32[2,8,128], index: 5, kind: output, shape index: {}]
  %s6 = sld [smem:[#allocation0]]
  $region99: #{tpu_custom_call.1} parent=0
    _
  %s8 = ssub.s32 1, %s6
  %s9 = scalar_select 0, %s8, %s6
  $region1: #{tpu_custom_call.1} parent=0
    #allocation3 [shape = 'u8[32768]{0}', space=vmem, size = 0x8000, scoped, tag = 'input window, operand 1']
    #allocation4 [shape = 'u8[8192]{0}', space=vmem, size = 0x2000, scoped, tag = 'output window, operand 0']
    #allocation5 [shape = 's32[2]{0}', space=sflag, size = 0x8, scoped, tag = 'scoped memory for tpu_custom_call.1']
    %10 = vsyncpa [#allocation5], 0
    %s11 = scalar_lea.sflag [#allocation5], 1
    %12 = vsyncpa %s11, 0
    loop: start=0, step=1, limit=6
    $region2: #{tpu_custom_call.1} parent=1 // loop_pre_header
      _
    $region3: #{tpu_custom_call.1} parent=1 // loop_header
      %s14 = sphi 0, %s18
      %p15 = scmp.ge.s32.totalorder %s14, 6
      %s21 = sphi 0, %s33
      %s22 = sphi 0, %s29
      %s23 = sphi 0, %s21
      %s24 = sphi 0, %s22
      %s25 = sphi 0, %s23
      %s26 = sphi 0, %s24
      %s36 = sphi 0, %s38
      %s39 = sphi 0, %s36
      %s40 = sphi 0, %s39
      %s56 = sphi 0, %s40
      %s62 = sphi 0, %s64
      %s65 = sphi 0, %s62
      %s66 = sphi 0, %s65
      %s82 = sphi 0, %s66
      %s88 = sphi 0, %s90
      %s91 = sphi 0, %s88
      %s92 = sphi 0, %s91
      %s108 = sphi 0, %s92
      %s114 = sphi 0, %s116
      %s117 = sphi 0, %s114
      %s118 = sphi 0, %s117
      %s134 = sphi 0, %s118
      %s142 = sphi 0, %s144
      %s145 = sphi 0, %s142
      %s146 = sphi 0, %s145
      %s162 = sphi 0, %s146
      %s168 = sphi 0, %s170
      %s171 = sphi 0, %s168
      %s172 = sphi 0, %s171
      %s188 = sphi 0, %s172
    $region4: #{tpu_custom_call.1} parent=1 // loop_header_branch
      %17 = sbr.rel (%p15) target = $region8
    $region5: #{tpu_custom_call.1} parent=1 // loop_body
      %s19 = ssub.s32 %s14, 1
      %s20 = ssub.s32 %s14, 2
      %s27 = sadd.s32 1, %s22
      %p28 = scmp.ge.s32.totalorder %s27, 2
      %s29 = scalar_select %p28, 0, %s27
      %s30 = sadd.s32 1, %s21
      %s31 = scalar_select %p28, %s30, %s21
      %p32 = scmp.ge.s32.totalorder %s31, 2
      %s33 = scalar_select %p32, 0, %s31
      %s34 = ssub.s32 %s21, %s33
      %p35 = scmp.eq.s32.totalorder %s34, 0
      %s37 = sadd.s32 %s36, 1
      %s38 = scalar_select %p35, %s36, %s37
      %p41 = pneg %p35
      %p42 = scmp.eq.s32.totalorder %s14, 3
      %p43 = por %p41, %p42
      %p44 = scmp.ne.s32.totalorder %s36, %s39
      %p45 = scmp.eq.s32.totalorder %s14, 0
      %p46 = por %p44, %p45
      %p47 = scmp.ne.s32.totalorder %s36, %s39
      %p48 = scmp.eq.s32.totalorder %s19, 3
      %p49 = por %p47, %p48
      %p50 = scmp.ne.s32.totalorder %s39, %s40
      %p51 = scmp.eq.s32.totalorder %s19, 0
      %p52 = por %p50, %p51
      %p53 = scmp.ne.s32.totalorder %s39, %s40
      %p54 = scmp.eq.s32.totalorder %s20, 3
      %p55 = por %p53, %p54
      %p57 = scmp.ne.s32.totalorder %s40, %s56
      %p58 = scmp.eq.s32.totalorder %s20, 0
      %p59 = por %p57, %p58
      %s60 = ssub.s32 %s22, %s29
      %p61 = scmp.eq.s32.totalorder %s60, 0
      %s63 = sadd.s32 %s62, 1
      %s64 = scalar_select %p61, %s62, %s63
      %p67 = pneg %p61
      %p68 = scmp.eq.s32.totalorder %s14, 3
      %p69 = por %p67, %p68
      %p70 = scmp.ne.s32.totalorder %s62, %s65
      %p71 = scmp.eq.s32.totalorder %s14, 0
      %p72 = por %p70, %p71
      %p73 = scmp.ne.s32.totalorder %s62, %s65
      %p74 = scmp.eq.s32.totalorder %s19, 3
      %p75 = por %p73, %p74
      %p76 = scmp.ne.s32.totalorder %s65, %s66
      %p77 = scmp.eq.s32.totalorder %s19, 0
      %p78 = por %p76, %p77
      %p79 = scmp.ne.s32.totalorder %s65, %s66
      %p80 = scmp.eq.s32.totalorder %s20, 3
      %p81 = por %p79, %p80
      %p83 = scmp.ne.s32.totalorder %s66, %s82
      %p84 = scmp.eq.s32.totalorder %s20, 0
      %p85 = por %p83, %p84
      %s86 = ssub.s32 %s21, %s33
      %p87 = scmp.eq.s32.totalorder %s86, 0
      %s89 = sadd.s32 %s88, 1
      %s90 = scalar_select %p87, %s88, %s89
      %p93 = pneg %p87
      %p94 = scmp.eq.s32.totalorder %s14, 3
      %p95 = por %p93, %p94
      %p96 = scmp.ne.s32.totalorder %s88, %s91
      %p97 = scmp.eq.s32.totalorder %s14, 0
      %p98 = por %p96, %p97
      %p99 = scmp.ne.s32.totalorder %s88, %s91
      %p100 = scmp.eq.s32.totalorder %s19, 3
      %p101 = por %p99, %p100
      %p102 = scmp.ne.s32.totalorder %s91, %s92
      %p103 = scmp.eq.s32.totalorder %s19, 0
      %p104 = por %p102, %p103
      %p105 = scmp.ne.s32.totalorder %s91, %s92
      %p106 = scmp.eq.s32.totalorder %s20, 3
      %p107 = por %p105, %p106
      %p109 = scmp.ne.s32.totalorder %s92, %s108
      %p110 = scmp.eq.s32.totalorder %s20, 0
      %p111 = por %p109, %p110
      %s112 = ssub.s32 %s22, %s29
      %p113 = scmp.eq.s32.totalorder %s112, 0
      %s115 = sadd.s32 %s114, 1
      %s116 = scalar_select %p113, %s114, %s115
      %p119 = pneg %p113
      %p120 = scmp.eq.s32.totalorder %s14, 3
      %p121 = por %p119, %p120
      %p122 = scmp.ne.s32.totalorder %s114, %s117
      %p123 = scmp.eq.s32.totalorder %s14, 0
      %p124 = por %p122, %p123
      %p125 = scmp.ne.s32.totalorder %s114, %s117
      %p126 = scmp.eq.s32.totalorder %s19, 3
      %p127 = por %p125, %p126
      %p128 = scmp.ne.s32.totalorder %s117, %s118
      %p129 = scmp.eq.s32.totalorder %s19, 0
      %p130 = por %p128, %p129
      %p131 = scmp.ne.s32.totalorder %s117, %s118
      %p132 = scmp.eq.s32.totalorder %s20, 3
      %p133 = por %p131, %p132
      %p135 = scmp.ne.s32.totalorder %s118, %s134
      %p136 = scmp.eq.s32.totalorder %s20, 0
      %p137 = por %p135, %p136
      %s138 = ssub.s32 %s21, %s33
      %s139 = ssub.s32 %s22, %s29
      %s140 = sor.u32 %s138, %s139
      %p141 = scmp.eq.s32.totalorder %s140, 0
      %s143 = sadd.s32 %s142, 1
      %s144 = scalar_select %p141, %s142, %s143
      %p147 = pneg %p141
      %p148 = scmp.eq.s32.totalorder %s14, 3
      %p149 = por %p147, %p148
      %p150 = scmp.ne.s32.totalorder %s142, %s145
      %p151 = scmp.eq.s32.totalorder %s14, 0
      %p152 = por %p150, %p151
      %p153 = scmp.ne.s32.totalorder %s142, %s145
      %p154 = scmp.eq.s32.totalorder %s19, 3
      %p155 = por %p153, %p154
      %p156 = scmp.ne.s32.totalorder %s145, %s146
      %p157 = scmp.eq.s32.totalorder %s19, 0
      %p158 = por %p156, %p157
      %p159 = scmp.ne.s32.totalorder %s145, %s146
      %p160 = scmp.eq.s32.totalorder %s20, 3
      %p161 = por %p159, %p160
      %p163 = scmp.ne.s32.totalorder %s146, %s162
      %p164 = scmp.eq.s32.totalorder %s20, 0
      %p165 = por %p163, %p164
      %s166 = ssub.s32 %s21, %s33
      %p167 = scmp.eq.s32.totalorder %s166, 0
      %s169 = sadd.s32 %s168, 1
      %s170 = scalar_select %p167, %s168, %s169
      %p173 = pneg %p167
      %p174 = scmp.eq.s32.totalorder %s14, 3
      %p175 = por %p173, %p174
      %p176 = scmp.ne.s32.totalorder %s168, %s171
      %p177 = scmp.eq.s32.totalorder %s14, 0
      %p178 = por %p176, %p177
      %p179 = scmp.ne.s32.totalorder %s168, %s171
      %p180 = scmp.eq.s32.totalorder %s19, 3
      %p181 = por %p179, %p180
      %p182 = scmp.ne.s32.totalorder %s171, %s172
      %p183 = scmp.eq.s32.totalorder %s19, 0
      %p184 = por %p182, %p183
      %p185 = scmp.ne.s32.totalorder %s171, %s172
      %p186 = scmp.eq.s32.totalorder %s20, 3
      %p187 = por %p185, %p186
      %p189 = scmp.ne.s32.totalorder %s172, %s188
      %p190 = scmp.eq.s32.totalorder %s20, 0
      %p191 = por %p189, %p190
      %p192 = scmp.le.s32.totalorder 1, %s14
      %p193 = scmp.lt.s32.totalorder %s14, 5
      %p194 = pnand %p192, %p193
      %p195 = pneg %p194
      // Predicated region
      $region9: #{tpu_custom_call.1} parent=5 // pred_check
        _
      $region10: #{tpu_custom_call.1} parent=5 // pred_check_branch
        %197 = sbr.rel (%p194) target = $region12
      $region11: #{tpu_custom_call.1} parent=5 // pred_region
        %s198 = ssub.s32 %s14, 1
      $region12: #{tpu_custom_call.1} parent=5 // pred_fallthru
        _
      %p199 = scmp.lt.s32.totalorder %s14, 4
      // Predicated region
      $region13: #{tpu_custom_call.1} parent=5 // pred_check
        %p200 = pneg %p199
      $region14: #{tpu_custom_call.1} parent=5 // pred_check_branch
        %202 = sbr.rel (%p200) target = $region16
      $region15: #{tpu_custom_call.1} parent=5 // pred_region
        // Predicated region
        $region17: #{tpu_custom_call.1} parent=15 // pred_check
          %p203 = pneg %p46
        $region18: #{tpu_custom_call.1} parent=15 // pred_check_branch
          %205 = sbr.rel (%p203) target = $region20
        $region19: #{tpu_custom_call.1} parent=15 // pred_region
          %s206 = smul.u32 4, %s21
          %p207 = scmp.lt.s32.totalorder %s206, 7
          %s208 = scalar_select %p207, %s206, 7
          %s209 = smul.addr %s208, 8
          %s210 = scalar_lea.vmem %s0, %s209
          %s211 = smul.u32 4, %s21
        $region20: #{tpu_custom_call.1} parent=15 // pred_fallthru
          _
        // Predicated region
        $region21: #{tpu_custom_call.1} parent=15 // pred_check
          %p212 = pneg %p72
        $region22: #{tpu_custom_call.1} parent=15 // pred_check_branch
          %214 = sbr.rel (%p212) target = $region24
        $region23: #{tpu_custom_call.1} parent=15 // pred_region
          %s215 = sand.u32 %s62, 1
          %s216 = sand.u32 %s62, 1
          %s217 = smul.addr %s216, 32
          %s218 = scalar_lea.vmem [#allocation3], %s217
          %s219 = smul.addr %s22, 8
          %s220 = scalar_lea.vmem %s1, %s219
          // Predicated region
          $region25: #{tpu_custom_call.1} parent=23 // pred_check
            _
          $region26: #{tpu_custom_call.1} parent=23 // pred_check_branch
            %222 = sbr.rel (0) target = $region28
          $region27: #{tpu_custom_call.1} parent=23 // pred_region
            // Predicated region
            $region29: #{tpu_custom_call.1} parent=27 // pred_check
              _
            $region30: #{tpu_custom_call.1} parent=27 // pred_check_branch
              %224 = sbr.rel (0) target = $region32
            $region31: #{tpu_custom_call.1} parent=27 // pred_region
              // Predicated region
              $region44: #{tpu_custom_call.1} parent=31 // pred_check
                _
              $region45: #{tpu_custom_call.1} parent=31 // pred_check_branch
                %245 = sbr.rel (0) target = $region47
              $region46: #{tpu_custom_call.1} parent=31 // pred_region
                loop: start=0, step=1, limit=1
                $region48: #{tpu_custom_call.1} parent=46 // loop_pre_header
                  _
                $region49: #{tpu_custom_call.1} parent=46 // loop_header
                  %s247 = sphi 0, %s251
                  %p248 = scmp.ge.s32.totalorder %s247, 1
                  %s252 = sphi %s220, %s220
                  %s253 = sphi %s218, %s218
                $region50: #{tpu_custom_call.1} parent=46 // loop_header_branch
                  %250 = sbr.rel (%p248) target = $region54
                $region51: #{tpu_custom_call.1} parent=46 // loop_body
                  %v254 = vld [vmem:[%s252] sm:$0xff]
                  %255 = vst [vmem:[%s253] sm:$0xff] %v254
                  %v256 = vld [vmem:[%s252 + $0x10] sm:$0xff]
                  %257 = vst [vmem:[%s253 + $0x8] sm:$0xff] %v256
                  %v258 = vld [vmem:[%s252 + $0x20] sm:$0xff]
                  %259 = vst [vmem:[%s253 + $0x10] sm:$0xff] %v258
                  %v260 = vld [vmem:[%s252 + $0x30] sm:$0xff]
                  %261 = vst [vmem:[%s253 + $0x18] sm:$0xff] %v260
                $region52: #{tpu_custom_call.1} parent=46 // loop_footer
                  %s251 = sadd.s32 1, %s247
                $region53: #{tpu_custom_call.1} parent=46 // loop_footer_branch
                  %246 = sbr.rel target = $region49
                $region54: #{tpu_custom_call.1} parent=46 // loop_exit
                  _
              $region47: #{tpu_custom_call.1} parent=31 // pred_fallthru
                _
              // Predicated region
              $region55: #{tpu_custom_call.1} parent=31 // pred_check
                _
              $region56: #{tpu_custom_call.1} parent=31 // pred_check_branch
                %263 = sbr.rel target = $region58
              $region57: #{tpu_custom_call.1} parent=31 // pred_region
                _
              $region58: #{tpu_custom_call.1} parent=31 // pred_fallthru
                _
            $region32: #{tpu_custom_call.1} parent=27 // pred_fallthru
              _
            // Predicated region
            $region33: #{tpu_custom_call.1} parent=27 // pred_check
              _
            $region34: #{tpu_custom_call.1} parent=27 // pred_check_branch
              %226 = sbr.rel target = $region36
            $region35: #{tpu_custom_call.1} parent=27 // pred_region
              loop: start=0, step=1, limit=1
              $region37: #{tpu_custom_call.1} parent=35 // loop_pre_header
                _
              $region38: #{tpu_custom_call.1} parent=35 // loop_header
                %s229 = sphi 0, %s233
                %p230 = scmp.ge.s32.totalorder %s229, 1
                %s234 = sphi %s220, %s220
                %s235 = sphi %s218, %s218
              $region39: #{tpu_custom_call.1} parent=35 // loop_header_branch
                %232 = sbr.rel (%p230) target = $region43
              $region40: #{tpu_custom_call.1} parent=35 // loop_body
                %v236 = vld [vmem:[%s234] sm:$0xff]
                %237 = vst [vmem:[%s235] sm:$0xff] %v236
                %v238 = vld [vmem:[%s234 + $0x10] sm:$0xff]
                %239 = vst [vmem:[%s235 + $0x8] sm:$0xff] %v238
                %v240 = vld [vmem:[%s234 + $0x20] sm:$0xff]
                %241 = vst [vmem:[%s235 + $0x10] sm:$0xff] %v240
                %v242 = vld [vmem:[%s234 + $0x30] sm:$0xff]
                %243 = vst [vmem:[%s235 + $0x18] sm:$0xff] %v242
              $region41: #{tpu_custom_call.1} parent=35 // loop_footer
                %s233 = sadd.s32 1, %s229
              $region42: #{tpu_custom_call.1} parent=35 // loop_footer_branch
                %228 = sbr.rel target = $region38
              $region43: #{tpu_custom_call.1} parent=35 // loop_exit
                _
            $region36: #{tpu_custom_call.1} parent=27 // pred_fallthru
              _
          $region28: #{tpu_custom_call.1} parent=23 // pred_fallthru
            _
          %264 = vnop
        $region24: #{tpu_custom_call.1} parent=15 // pred_fallthru
          _
        // Predicated region
        $region59: #{tpu_custom_call.1} parent=15 // pred_check
          %p265 = pneg %p98
        $region60: #{tpu_custom_call.1} parent=15 // pred_check_branch
          %267 = sbr.rel (%p265) target = $region62
        $region61: #{tpu_custom_call.1} parent=15 // pred_region
          %s268 = smul.u32 4, %s21
          %p269 = scmp.lt.s32.totalorder %s268, 7
          %s270 = scalar_select %p269, %s268, 7
          %s271 = smul.addr %s270, 8
          %s272 = scalar_lea.vmem %s2, %s271
          %s273 = smul.u32 4, %s21
        $region62: #{tpu_custom_call.1} parent=15 // pred_fallthru
          _
        // Predicated region
        $region63: #{tpu_custom_call.1} parent=15 // pred_check
          %p274 = pneg %p124
        $region64: #{tpu_custom_call.1} parent=15 // pred_check_branch
          %276 = sbr.rel (%p274) target = $region66
        $region65: #{tpu_custom_call.1} parent=15 // pred_region
          %p277 = scmp.lt.s32.totalorder %s22, 1
          %s278 = scalar_select %p277, %s22, 1
          %s279 = scalar_lea.vmem %s3, %s278
        $region66: #{tpu_custom_call.1} parent=15 // pred_fallthru
          _
        // Predicated region
        $region67: #{tpu_custom_call.1} parent=15 // pred_check
          %p280 = pneg %p152
        $region68: #{tpu_custom_call.1} parent=15 // pred_check_branch
          %282 = sbr.rel (%p280) target = $region70
        $region69: #{tpu_custom_call.1} parent=15 // pred_region
          %p283 = scmp.lt.s32.totalorder %s21, 1
          %s284 = scalar_select %p283, %s21, 1
          %p285 = scmp.lt.s32.totalorder %s22, 1
          %s286 = scalar_select %p285, %s22, 1
          %s287 = smul.addr %s284, 2
          %s288 = sadd.s32 %s286, %s287
          %s289 = smul.addr %s288, 8
          %s290 = scalar_lea.vmem %s4, %s289
        $region70: #{tpu_custom_call.1} parent=15 // pred_fallthru
          _
      $region16: #{tpu_custom_call.1} parent=5 // pred_fallthru
        _
      %p291 = scmp.le.s32.totalorder 1, %s14
      %p292 = scmp.lt.s32.totalorder %s14, 5
      %p293 = pnand %p291, %p292
      %p294 = pneg %p293
      // Predicated region
      $region71: #{tpu_custom_call.1} parent=5 // pred_check
        _
      $region72: #{tpu_custom_call.1} parent=5 // pred_check_branch
        %296 = sbr.rel (%p293) target = $region74
      $region73: #{tpu_custom_call.1} parent=5 // pred_region
        %s297 = ssub.s32 %s14, 1
        %s298 = sand.u32 %s65, 1
        %s299 = sand.u32 %s65, 1
        %s300 = smul.addr %s299, 32
        %s301 = scalar_lea.vmem [#allocation3], %s300
        // Predicated region
        $region75: #{tpu_custom_call.1} parent=73 // pred_check
          %p302 = pneg %p78
        $region76: #{tpu_custom_call.1} parent=73 // pred_check_branch
          %304 = sbr.rel (%p302) target = $region78
        $region77: #{tpu_custom_call.1} parent=73 // pred_region
          _
        $region78: #{tpu_custom_call.1} parent=73 // pred_fallthru
          _
        %s305 = smul.u32 4, %s23
        %p306 = scmp.lt.s32.totalorder %s305, 7
        %s307 = scalar_select %p306, %s305, 7
        %s308 = smul.addr %s307, 8
        %s309 = scalar_lea.vmem %s0, %s308
        %p310 = pneg %p52
        %p311 = pneg %p49
        %s312 = sand.u32 %s65, 1
        %s313 = sand.u32 %s65, 1
        %s314 = smul.addr %s313, 32
        %s315 = scalar_lea.vmem [#allocation3], %s314
        %p316 = pneg %p78
        %p317 = pneg %p75
        %s318 = smul.u32 4, %s23
        %p319 = scmp.lt.s32.totalorder %s318, 7
        %s320 = scalar_select %p319, %s318, 7
        %s321 = smul.addr %s320, 8
        %s322 = scalar_lea.vmem %s2, %s321
        %p323 = pneg %p104
        %p324 = pneg %p101
        %p325 = scmp.lt.s32.totalorder %s24, 1
        %s326 = scalar_select %p325, %s24, 1
        %s327 = scalar_lea.vmem %s3, %s326
        %p328 = pneg %p130
        %p329 = pneg %p127
        %p330 = scmp.lt.s32.totalorder %s23, 1
        %s331 = scalar_select %p330, %s23, 1
        %p332 = scmp.lt.s32.totalorder %s24, 1
        %s333 = scalar_select %p332, %s24, 1
        %s334 = smul.addr %s331, 2
        %s335 = sadd.s32 %s333, %s334
        %s336 = smul.addr %s335, 8
        %s337 = scalar_lea.vmem %s4, %s336
        %p338 = pneg %p158
        %p339 = pneg %p155
        %p340 = pneg %p184
        %p341 = pneg %p181
        %s342 = sand.u32 %s171, 1
        %s343 = scalar_lea.sflag [#allocation5], %s342
        %s344 = sand.u32 %s171, 1
        %s345 = smul.addr %s344, 8
        %s346 = scalar_lea.vmem [#allocation4], %s345
        %s347 = smul.u32 4, %s23
        %p348 = scmp.lt.s32.totalorder %s347, 7
        %s349 = scalar_select %p348, %s347, 7
        %s350 = smul.addr %s349, 8
        %s351 = scalar_lea.vmem %s0, %s350
        %s352 = smul.u32 4, %s23
        %s353 = smul.u32 4, %s23
        %p354 = scmp.lt.s32.totalorder %s353, 7
        %s355 = scalar_select %p354, %s353, 7
        %s356 = smul.addr %s355, 8
        %s357 = scalar_lea.vmem %s2, %s356
        %s358 = smul.u32 4, %s23
        %p359 = scmp.lt.s32.totalorder %s24, 1
        %s360 = scalar_select %p359, %s24, 1
        %s361 = scalar_lea.vmem %s3, %s360
        %p362 = scmp.lt.s32.totalorder %s23, 1
        %s363 = scalar_select %p362, %s23, 1
        %p364 = scmp.lt.s32.totalorder %s24, 1
        %s365 = scalar_select %p364, %s24, 1
        %s366 = smul.addr %s363, 2
        %s367 = sadd.s32 %s365, %s366
        %s368 = smul.addr %s367, 8
        %s369 = scalar_lea.vmem %s4, %s368
        %p370 = scmp.eq.s32.totalorder %s24, 0
        // Predicated region
        $region79: #{tpu_custom_call.1} parent=73 // pred_check
          %p371 = pneg %p370
        $region80: #{tpu_custom_call.1} parent=73 // pred_check_branch
          %373 = sbr.rel (%p371) target = $region82
        $region81: #{tpu_custom_call.1} parent=73 // pred_region
          %374 = vst [vmem:[#allocation2] sm:$0xff] 0.0
        $region82: #{tpu_custom_call.1} parent=73 // pred_fallthru
          _
        %v375 = vld [vmem:[%s351] sm:$0xff]
        %v376 = vld [vmem:[%s351 + $0x8] sm:$0xff]
        %v377 = vld [vmem:[%s351 + $0x10] sm:$0xff]
        %v378 = vld [vmem:[%s351 + $0x18] sm:$0xff]
        %v379 = vld [vmem:[%s301] sm:$0xff]
        %v380 = vld [vmem:[%s301 + $0x8] sm:$0xff]
        %v381 = vld [vmem:[%s301 + $0x10] sm:$0xff]
        %v382 = vld [vmem:[%s301 + $0x18] sm:$0xff]
        %vm383 = vcmask 261120
        %v385 = vsel %vm383, %v375, 0
        %v388 = vsel %vm383, %v376, 0
        %v391 = vsel %vm383, %v377, 0
        %v394 = vsel %vm383, %v378, 0
        %396 = vmatprep.subr.mxu0 0.0
        %397 = vmatpush1.msra.mxu0 %v379
        %398 = vmatprep.subr.mxu0 0.0
        %399 = vmatpush1.msra.mxu0 %v380
        %400 = vmatprep.subr.mxu0 0.0
        %401 = vmatpush1.msra.mxu0 %v381
        %402 = vmatprep.subr.mxu0 0.0
        %403 = vmatpush1.msra.mxu0 %v382
        %404 = vmatprep.subr.mxu0 0.0
        %405 = vmatpush1.msra.mxu0 0.0
        %406 = vmatprep.subr.mxu0 0.0
        %407 = vmatpush1.msra.mxu0 0.0
        %408 = vmatprep.subr.mxu0 0.0
        %409 = vmatpush1.msra.mxu0 0.0
        %410 = vmatprep.subr.mxu0 0.0
        %411 = vmatpush1.msra.mxu0 0.0
        %412 = vmatprep.subr.mxu0 0.0
        %413 = vmatpush1.msra.mxu0 0.0
        %414 = vmatprep.subr.mxu0 0.0
        %415 = vmatpush1.msra.mxu0 0.0
        %416 = vmatprep.subr.mxu0 0.0
        %417 = vmatpush1.msra.mxu0 0.0
        %418 = vmatprep.subr.mxu0 0.0
        %419 = vmatpush1.msra.mxu0 0.0
        %420 = vmatprep.subr.mxu0 0.0
        %421 = vmatpush1.msra.mxu0 0.0
        %422 = vmatprep.subr.mxu0 0.0
        %423 = vmatpush1.msra.mxu0 0.0
        %424 = vmatprep.subr.mxu0 0.0
        %425 = vmatpush1.msra.mxu0 0.0
        %426 = vmatprep.subr.mxu0 0.0
        %427 = vmatpush1.msra.mxu0 0.0
        %428 = vmatprep.subr.mxu0 0.0
        %429 = vmatpush1.msra.mxu0 0.0
        %430 = vmatprep.subr.mxu0 0.0
        %431 = vmatpush1.msra.mxu0 0.0
        %432 = vmatprep.subr.mxu0 0.0
        %433 = vmatpush1.msra.mxu0 0.0
        %434 = vmatprep.subr.mxu0 0.0
        %435 = vmatpush1.msra.mxu0 0.0
        %436 = vmatprep.subr.mxu0 0.0
        %437 = vmatpush1.msra.mxu0 0.0
        %438 = vmatprep.subr.mxu0 0.0
        %439 = vmatpush1.msra.mxu0 0.0
        %440 = vmatprep.subr.mxu0 0.0
        %441 = vmatpush1.msra.mxu0 0.0
        %442 = vmatprep.subr.mxu0 0.0
        %443 = vmatpush1.msra.mxu0 0.0
        %444 = vmatprep.subr.mxu0 0.0
        %445 = vmatpush1.msra.mxu0 0.0
        %446 = vmatprep.subr.mxu0 0.0
        %447 = vmatpush1.msra.mxu0 0.0
        %448 = vmatprep.subr.mxu0 0.0
        %449 = vmatpush1.msra.mxu0 0.0
        %450 = vmatprep.subr.mxu0 0.0
        %451 = vmatpush1.msra.mxu0 0.0
        %452 = vmatprep.subr.mxu0 0.0
        %453 = vmatpush1.msra.mxu0 0.0
        %454 = vmatprep.subr.mxu0 0.0
        %455 = vmatpush1.msra.mxu0 0.0
        %456 = vmatprep.subr.mxu0 0.0
        %457 = vmatpush1.msra.mxu0 0.0
        %458 = vmatprep.subr.mxu0 0.0
        %459 = vmatpush1.msra.mxu0 0.0
        %460 = vmatprep.mubr.f32.mxu0 0.0
        %461 = vmatmul.mubr.f32.gmra.mrb[0].mxu0 %v385
        %v462 = vpop.f32.mrb[0].mxu0
        %v463 = vadd.f32 0.0, %v462
        %v464 = vpop.f32.mrb[0].mxu0
        %465 = vmatprep.mubr.f32.mxu0 0.0
        %466 = vmatmul.mubr.f32.gmra.mrb[0].mxu0 %v388
        %v467 = vpop.f32.mrb[0].mxu0
        %v468 = vadd.f32 0.0, %v467
        %v469 = vpop.f32.mrb[0].mxu0
        %470 = vmatprep.mubr.f32.mxu0 0.0
        %471 = vmatmul.mubr.f32.gmra.mrb[0].mxu0 %v391
        %v472 = vpop.f32.mrb[0].mxu0
        %v473 = vadd.f32 0.0, %v472
        %v474 = vpop.f32.mrb[0].mxu0
        %475 = vmatprep.mubr.f32.mxu0 0.0
        %476 = vmatmul.mubr.f32.gmra.mrb[0].mxu0 %v394
        %v477 = vpop.f32.mrb[0].mxu0
        %v478 = vadd.f32 0.0, %v477
        %v479 = vpop.f32.mrb[0].mxu0
        %480 = vdwg.mxu0
        %v481 = vld [vmem:[%s357] sm:$0xff]
        %v482 = vld [vmem:[%s357 + $0x8] sm:$0xff]
        %v483 = vld [vmem:[%s357 + $0x10] sm:$0xff]
        %v484 = vld [vmem:[%s357 + $0x18] sm:$0xff]
        %v485 = vld [vmem:[%s361] sm:$0x1]
        %487 = vset.pattern.permute.xlu0 0
        %488 = vperm.xlu0 %487, %v481
        %v489 = vpop.permute.xlu0 %488
        %492 = vset.pattern.permute.xlu0 0
        %493 = vperm.xlu0 %492, %v482
        %v494 = vpop.permute.xlu0 %493
        %497 = vset.pattern.permute.xlu0 0
        %498 = vperm.xlu0 %497, %v483
        %v499 = vpop.permute.xlu0 %498
        %502 = vset.pattern.permute.xlu0 0
        %503 = vperm.xlu0 %502, %v484
        %v504 = vpop.permute.xlu0 %503
        %v507 = vlaneseq
        %v508 = vshrl.u32 %v507, 7
        %v509 = vsub.s32 0, %v508
        %v510 = vrot.slane %v485, %v509
        %v512 = vadd.f32 %v489, %v510
        %v513 = vadd.f32 %v494, %v510
        %v514 = vadd.f32 %v499, %v510
        %v515 = vadd.f32 %v504, %v510
        %v516 = vmul.f32 %v463, 2.0
        %v517 = vmul.f32 %v468, 2.0
        %v518 = vmul.f32 %v473, 2.0
        %v519 = vmul.f32 %v478, 2.0
        %v520 = vsub.f32 %v512, %v516
        %v521 = vsub.f32 %v513, %v517
        %v522 = vsub.f32 %v514, %v518
        %v523 = vsub.f32 %v515, %v519
        %v524 = vmax.f32 %v520, 0.0
        %v525 = vmax.f32 %v521, 0.0
        %v526 = vmax.f32 %v522, 0.0
        %v527 = vmax.f32 %v523, 0.0
        %v528 = vrsqrt.pop %v524
        %v529 = vmul.f32 %v524, %v528
        %vm530 = vcmp.eq.f32.partialorder %v524, inf
        %v531 = vsel %vm530, %v524, %v529
        %vm532 = vcmp.eq.f32.partialorder %v524, 0.0
        %v533 = vand.u32 %v524, 2147483648
        %v534 = vsel %vm532, %v533, %v531
        %v535 = vrsqrt.pop %v525
        %v536 = vmul.f32 %v525, %v535
        %vm537 = vcmp.eq.f32.partialorder %v525, inf
        %v538 = vsel %vm537, %v525, %v536
        %vm539 = vcmp.eq.f32.partialorder %v525, 0.0
        %v540 = vand.u32 %v525, 2147483648
        %v541 = vsel %vm539, %v540, %v538
        %v542 = vrsqrt.pop %v526
        %v543 = vmul.f32 %v526, %v542
        %vm544 = vcmp.eq.f32.partialorder %v526, inf
        %v545 = vsel %vm544, %v526, %v543
        %vm546 = vcmp.eq.f32.partialorder %v526, 0.0
        %v547 = vand.u32 %v526, 2147483648
        %v548 = vsel %vm546, %v547, %v545
        %v549 = vrsqrt.pop %v527
        %v550 = vmul.f32 %v527, %v549
        %vm551 = vcmp.eq.f32.partialorder %v527, inf
        %v552 = vsel %vm551, %v527, %v550
        %vm553 = vcmp.eq.f32.partialorder %v527, 0.0
        %v554 = vand.u32 %v527, 2147483648
        %v555 = vsel %vm553, %v554, %v552
        %v556 = vld [vmem:[%s369] sm:$0xff]
        %v557 = vunpack.c.0.s8 %v556
        %v558 = vunpack.c.1.s8 %v556
        %v559 = vunpack.c.2.s8 %v556
        %v560 = vunpack.c.3.s8 %v556
        %v561 = vcvt.s32.f32 %v557
        %v562 = vcvt.s32.f32 %v558
        %v563 = vcvt.s32.f32 %v559
        %v564 = vcvt.s32.f32 %v560
        %v565 = vsub.f32 2.0, %v534
        %v566 = vsub.f32 2.0, %v541
        %v567 = vsub.f32 2.0, %v548
        %v568 = vsub.f32 2.0, %v555
        %v569 = vmax.f32 %v565, 0.0
        %v570 = vmax.f32 %v566, 0.0
        %v571 = vmax.f32 %v567, 0.0
        %v572 = vmax.f32 %v568, 0.0
        %v573 = vmul.f32 %v569, %v569
        %v574 = vmul.f32 %v570, %v570
        %v575 = vmul.f32 %v571, %v571
        %v576 = vmul.f32 %v572, %v572
        %v577 = vsub.f32 %v573, %v524
        %v578 = vsub.f32 %v574, %v525
        %v579 = vsub.f32 %v575, %v526
        %v580 = vsub.f32 %v576, %v527
        %v581 = vmul.f32 %v561, %v577
        %v582 = vmul.f32 %v562, %v578
        %v583 = vmul.f32 %v563, %v579
        %v584 = vmul.f32 %v564, %v580
        %v585 = vadd.f32 %v524, %v581
        %v586 = vadd.f32 %v525, %v582
        %v587 = vadd.f32 %v526, %v583
        %v588 = vadd.f32 %v527, %v584
        %v589 = vlaneseq
        %v590 = vshrl.u32 %v589, 7
        %v591 = vadd.s32 %v590, 8
        %v592 = vadd.s32 %v590, 16
        %v593 = vadd.s32 %v590, 24
        %s594 = smul.u32 %s23, 32
        %v595 = vstv %s594
        %v596 = vadd.s32 %v590, %v595
        %v597 = vadd.s32 %v591, %v595
        %v598 = vadd.s32 %v592, %v595
        %v599 = vadd.s32 %v593, %v595
        %vm600 = vcmp.lt.s32.totalorder %v596, 40
        %vm601 = vcmp.lt.s32.totalorder %v597, 40
        %vm602 = vcmp.lt.s32.totalorder %v598, 40
        %vm603 = vcmp.lt.s32.totalorder %v599, 40
        %v604 = vlaneseq
        %v605 = vand.u32 %v604, 127
        %s606 = smul.u32 %s24, 128
        %v607 = vstv %s606
        %v608 = vadd.s32 %v605, %v607
        %vm609 = vcmp.lt.s32.totalorder %v608, 200
        %vm610 = vmand %vm600, %vm609
        %vm611 = vmand %vm601, %vm609
        %vm612 = vmand %vm602, %vm609
        %vm613 = vmand %vm603, %vm609
        %v614 = vsel %vm610, %v585, 0.0
        %v615 = vsel %vm611, %v586, 0.0
        %v616 = vsel %vm612, %v587, 0.0
        %v617 = vsel %vm613, %v588, 0.0
        %v618 = vld [vmem:[#allocation2] sm:$0xff]
        %v619 = vadd.f32 %v614, %v615
        %v620 = vadd.f32 %v619, %v616
        %v621 = vadd.f32 %v620, %v617
        %v622 = vadd.f32 %v618, %v621
        %623 = vst [vmem:[#allocation2] sm:$0xff] %v622
        %p624 = scmp.eq.s32.totalorder %s24, 1
        // Predicated region
        $region83: #{tpu_custom_call.1} parent=73 // pred_check
          %p625 = pneg %p624
        $region84: #{tpu_custom_call.1} parent=73 // pred_check_branch
          %627 = sbr.rel (%p625) target = $region86
        $region85: #{tpu_custom_call.1} parent=73 // pred_region
          %v628 = vld [vmem:[#allocation2] sm:$0xff]
          %629 = vst [vmem:[%s346] sm:$0xff] %v628
        $region86: #{tpu_custom_call.1} parent=73 // pred_fallthru
          _
        %s630 = sand.u32 %s171, 1
        %s631 = scalar_lea.sflag [#allocation5], %s630
        %s632 = sand.u32 %s171, 1
        %s633 = smul.addr %s632, 8
        %s634 = scalar_lea.vmem [#allocation4], %s633
        // Predicated region
        $region87: #{tpu_custom_call.1} parent=73 // pred_check
          %p635 = pneg %p181
        $region88: #{tpu_custom_call.1} parent=73 // pred_check_branch
          %637 = sbr.rel (%p635) target = $region90
        $region89: #{tpu_custom_call.1} parent=73 // pred_region
          %s639 = ssub.s32 128, 128
          %640 = vsyncadd %s631, %s639
          %s641 = smul.addr %s23, 128
          %s642 = scalar_lea.hbm %s5, %s641
          %s644 = sshll.u32 %s634, 4
          %s645 = int_to_ptr.vmem [resolvable:$true] %s644
          %647 = dma.vmem_to_hbm [thread:$0]  %s645, 128, %s642, %s631
        $region90: #{tpu_custom_call.1} parent=73 // pred_fallthru
          _
      $region74: #{tpu_custom_call.1} parent=5 // pred_fallthru
        _
      %p648 = scmp.le.s32.totalorder 2, %s14
      // Predicated region
      $region91: #{tpu_custom_call.1} parent=5 // pred_check
        %p649 = pneg %p648
      $region92: #{tpu_custom_call.1} parent=5 // pred_check_branch
        %651 = sbr.rel (%p649) target = $region94
      $region93: #{tpu_custom_call.1} parent=5 // pred_region
        %s652 = ssub.s32 %s14, 2
        // Predicated region
        $region95: #{tpu_custom_call.1} parent=93 // pred_check
          %p653 = pneg %p187
        $region96: #{tpu_custom_call.1} parent=93 // pred_check_branch
          %655 = sbr.rel (%p653) target = $region98
        $region97: #{tpu_custom_call.1} parent=93 // pred_region
          %s656 = sand.u32 %s172, 1
          %s657 = scalar_lea.sflag [#allocation5], %s656
          %s658 = sand.u32 %s172, 1
          %s659 = smul.addr %s658, 8
          %s660 = scalar_lea.vmem [#allocation4], %s659
          %661 = dma.done %s657, 128
        $region98: #{tpu_custom_call.1} parent=93 // pred_fallthru
          _
      $region94: #{tpu_custom_call.1} parent=5 // pred_fallthru
        _
    $region6: #{tpu_custom_call.1} parent=1 // loop_footer
      %s18 = sadd.s32 1, %s14
    $region7: #{tpu_custom_call.1} parent=1 // loop_footer_branch
      %13 = sbr.rel target = $region3
    $region8: #{tpu_custom_call.1} parent=1 // loop_exit
      _
    %662 = vsyncpa [#allocation5], 1
    %s663 = scalar_lea.sflag [#allocation5], 1
    %664 = vsyncpa %s663, 1

</llo_original>
